<compile_context>
chip_gen: v6e
topology: v6e:2x2x1
jax: 0.10.0
libtpu: 0.0.40
codegen_flags: <defaults>
</compile_context>

<pallas_src>
import math

import jax
import jax.numpy as jnp
from jax.experimental import pallas as pl
from jax.experimental.pallas import tpu as pltpu


def _round_up(a, m):
    return ((a + m - 1) // m) * m


def _sublane_multiple(dtype):
    itemsize = jnp.dtype(dtype).itemsize
    return {4: 8, 2: 16, 1: 32}.get(itemsize, 8)


def _nonlinear_kernel(x_ref, w_ref, b_ref, o_ref, acc_ref):
    # x_ref: (TM, TK)  w_ref: (TK, TN)  b_ref: (1, TN)  o_ref: (TM, TN)
    # acc_ref: (TM, TN) f32 scratch, resident across the K axis.
    kk = pl.program_id(2)

    @pl.when(kk == 0)
    def _():
        acc_ref[...] = jnp.zeros_like(acc_ref)

    # Native-dtype operands, f32 accumulation on the MXU.
    acc_ref[...] += jnp.dot(x_ref[...], w_ref[...],
                            preferred_element_type=jnp.float32)

    @pl.when(kk == pl.num_programs(2) - 1)
    def _():
        y = acc_ref[...] + b_ref[...].astype(jnp.float32)
        o_ref[...] = jnp.maximum(y, 0.0).astype(o_ref.dtype)


def nonlinear(x, w, b, *, tile_m=256, tile_n=256, tile_k=512):
    """ReLU(x @ w + b).

    x: [..., in_features]
    w: [in_features, out_features]  (pre-transposed nn.Linear weight)
    b: [out_features]
    """
    orig_leading = x.shape[:-1]
    in_features = x.shape[-1]
    out_features = w.shape[1]
    assert w.shape[0] == in_features and b.shape == (out_features,)

    x2 = x.reshape(-1, in_features)
    n_rows = x2.shape[0]

    # ---- tile selection -----------------------------------------------------
    # M: dtype-aware sublane multiple; ragged last block handled by cdiv grid
    # (no activation padding).
    sub = _sublane_multiple(x.dtype)
    tm = min(tile_m, _round_up(n_rows, sub))
    tm = _round_up(tm, sub)
    grid_m = pl.cdiv(n_rows, tm)

    # N: pad weights/bias to a lane-dense multiple of 128; pick the largest
    # tn <= tile_n that divides n_pad (128 always works).
    n_pad = _round_up(out_features, 128)
    tn = _round_up(min(tile_n, n_pad), 128)
    while n_pad % tn != 0 and tn > 128:
        tn //= 2
        tn = _round_up(tn, 128)
    if n_pad % tn != 0:
        tn = 128
    grid_n = n_pad // tn

    # K: single full-K block when it fits one tile (no padding needed even if
    # not 128-aligned), otherwise 128-aligned K tiles (pad x/w along K only if
    # in_features isn't a multiple of the tile).
    tile_k = _round_up(tile_k, 128)
    if in_features <= tile_k:
        tk = in_features
        k_pad = in_features
    else:
        tk = tile_k
        k_pad = _round_up(in_features, tk)
    grid_k = k_pad // tk

    # ---- operand preparation (pad only when required) -----------------------
    if k_pad != in_features:
        x_in = jnp.pad(x2, ((0, 0), (0, k_pad - in_features)))
    else:
        x_in = x2

    if k_pad != in_features or n_pad != out_features:
        w_in = jnp.pad(w, ((0, k_pad - in_features), (0, n_pad - out_features)))
    else:
        w_in = w

    b2 = b.reshape(1, out_features)
    if n_pad != out_features:
        b_in = jnp.pad(b2, ((0, 0), (0, n_pad - out_features)))
    else:
        b_in = b2

    # ---- VMEM budget & compiler params --------------------------------------
    x_it = jnp.dtype(x.dtype).itemsize
    w_it = jnp.dtype(w.dtype).itemsize
    b_it = jnp.dtype(b.dtype).itemsize
    o_it = x_it
    vmem_budget = (
        2 * tm * tk * x_it          # double-buffered activation tiles
        + 2 * tk * tn * w_it        # double-buffered weight tiles
        + 2 * 1 * tn * b_it         # double-buffered bias tiles
        + 2 * tm * tn * o_it        # double-buffered output tiles
        + tm * tn * 4               # f32 accumulator scratch
    )
    # Leave headroom, never below 16 MiB, never above a v7x-safe 48 MiB.
    vmem_limit = int(min(max(int(vmem_budget * 1.5) + (4 << 20), 16 << 20),
                         48 << 20))

    # ---- cost estimate (per-array itemsize + re-fetch factors) --------------
    cost = pl.CostEstimate(
        flops=int(2 * grid_m * tm * k_pad * n_pad),
        transcendentals=0,
        bytes_accessed=int(
            n_rows * k_pad * x_it * grid_n        # x re-streamed per N block
            + k_pad * n_pad * w_it * grid_m       # w re-streamed per M block
            + n_pad * b_it * grid_m
            + n_rows * n_pad * o_it
        ),
    )

    out = pl.pallas_call(
        _nonlinear_kernel,
        out_shape=jax.ShapeDtypeStruct((n_rows, n_pad), x.dtype),
        grid_spec=pltpu.PrefetchScalarGridSpec(
            num_scalar_prefetch=0,
            grid=(grid_m, grid_n, grid_k),
            in_specs=[
                pl.BlockSpec((tm, tk), lambda i, j, kk: (i, kk)),   # activations
                pl.BlockSpec((tk, tn), lambda i, j, kk: (kk, j)),   # weights
                pl.BlockSpec((1, tn), lambda i, j, kk: (0, j)),     # bias
            ],
            out_specs=pl.BlockSpec((tm, tn), lambda i, j, kk: (i, j)),
            scratch_shapes=[pltpu.VMEM((tm, tn), jnp.float32)],
        ),
        compiler_params=pltpu.CompilerParams(
            dimension_semantics=("parallel", "parallel", "arbitrary"),
            vmem_limit_bytes=vmem_limit,
        ),
        cost_estimate=cost,
    )(x_in, w_in, b_in)

    out = out[:, :out_features]
    return out.reshape(*orig_leading, out_features)


def reference_nonlinear(x, w, b):
    return jnp.maximum(x @ w + b, 0.0)


if __name__ == "__main__":
    # Small shapes consistent with the module: batch=2, seq=8, in=32, out=64.
    batch, seq, in_features, out_features = 2, 8, 32, 64
    key = jax.random.PRNGKey(0)
    kx, kw, kb = jax.random.split(key, 3)

    x = jax.random.normal(kx, (batch, seq, in_features), dtype=jnp.float32)

    # Deterministic parameter init (PyTorch Linear-style uniform bounds).
    bound = 1.0 / math.sqrt(in_features)
    w = jax.random.uniform(kw, (in_features, out_features), minval=-bound,
                           maxval=bound, dtype=jnp.float32)   # linear.weight.T
    b = jax.random.uniform(kb, (out_features,), minval=-bound, maxval=bound,
                           dtype=jnp.float32)

    out = nonlinear(x, w, b)
    jax.block_until_ready(out)

    # Correctness check vs. pure-JAX reference.
    ref = reference_nonlinear(x, w, b)
    assert out.shape == (batch, seq, out_features)
    assert jnp.allclose(out, ref, atol=1e-4, rtol=1e-4), "mismatch vs reference"

    # Exercise the K-tiled / ragged-M path as well (multiple K blocks, ragged rows).
    bigK, bigN, rows = 1152, 384, 300
    kx2, kw2, kb2 = jax.random.split(jax.random.PRNGKey(1), 3)
    x2 = jax.random.normal(kx2, (rows, bigK), dtype=jnp.float32)
    w2 = jax.random.normal(kw2, (bigK, bigN), dtype=jnp.float32) * 0.02
    b2 = jax.random.normal(kb2, (bigN,), dtype=jnp.float32)
    out2 = nonlinear(x2, w2, b2)
    jax.block_until_ready(out2)
    ref2 = reference_nonlinear(x2, w2, b2)
    assert jnp.allclose(out2, ref2, atol=2e-3, rtol=2e-3), "mismatch (tiled K)"

    print("KERNEL_OK")
</pallas_src>

<mosaic_0001>
module attributes {stable_mosaic.version = 11 : i64} {
  func.func @_nonlinear_kernel(%arg0: i32, %arg1: i32, %arg2: i32, %arg3: memref<16x32xf32, #tpu.memory_space<vmem>>, %arg4: memref<32x128xf32, #tpu.memory_space<vmem>>, %arg5: memref<1x128xf32, #tpu.memory_space<vmem>>, %arg6: memref<16x128xf32, #tpu.memory_space<vmem>>, %arg7: memref<16x128xf32, #tpu.memory_space<vmem>>) attributes {dimension_semantics = [#tpu.dimension_semantics<parallel>, #tpu.dimension_semantics<parallel>, #tpu.dimension_semantics<arbitrary>], iteration_bounds = array<i64: 1, 1, 1>, scalar_prefetch = 0 : i64, scratch_operands = 1 : i64, tpu.core_type = #tpu.core_type<tc>, window_params = [{transform_indices = @transform_0, window_bounds = array<i64: 16, 32>}, {transform_indices = @transform_1, window_bounds = array<i64: 32, 128>}, {transform_indices = @transform_2, window_bounds = array<i64: 1, 128>}, {transform_indices = @transform_3, window_bounds = array<i64: 16, 128>}]} {
    %c0_i32 = arith.constant 0 : i32
    %0 = arith.cmpi eq, %arg2, %c0_i32 : i32
    %1 = arith.extui %0 : i1 to i32
    %c0_i32_0 = arith.constant 0 : i32
    %2 = arith.cmpi ne, %1, %c0_i32_0 : i32
    scf.if %2 {
      %cst_10 = arith.constant 0.000000e+00 : f32
      %12 = vector.broadcast %cst_10 : f32 to vector<16x128xf32>
      %c0_11 = arith.constant 0 : index
      %c0_12 = arith.constant 0 : index
      %13 = vector.load %arg7[%c0_11, %c0_12] : memref<16x128xf32, #tpu.memory_space<vmem>>, vector<16x128xf32>
      tpu.vector_store %arg7[%c0_11, %c0_12], %12 {strides = array<i32>} : memref<16x128xf32, #tpu.memory_space<vmem>>, vector<16x128xf32>,
    } else {
    }
    %c0 = arith.constant 0 : index
    %c0_1 = arith.constant 0 : index
    %3 = vector.load %arg7[%c0, %c0_1] : memref<16x128xf32, #tpu.memory_space<vmem>>, vector<16x128xf32>
    %c0_2 = arith.constant 0 : index
    %c0_3 = arith.constant 0 : index
    %4 = vector.load %arg3[%c0_2, %c0_3] : memref<16x32xf32, #tpu.memory_space<vmem>>, vector<16x32xf32>
    %c0_4 = arith.constant 0 : index
    %c0_5 = arith.constant 0 : index
    %5 = vector.load %arg4[%c0_4, %c0_5] : memref<32x128xf32, #tpu.memory_space<vmem>>, vector<32x128xf32>
    %cst = arith.constant dense<0.000000e+00> : vector<16x128xf32>
    %6 = tpu.matmul %4, %5, %cst {dimension_numbers = #tpu.dot_dimension_numbers<[1], [0], [0], [1], [0, 0, 1, 1], [], []>} : vector<16x32xf32>, vector<32x128xf32>, vector<16x128xf32> -> vector<16x128xf32>
    %7 = arith.addf %3, %6 : vector<16x128xf32>
    %c0_6 = arith.constant 0 : index
    %c0_7 = arith.constant 0 : index
    %8 = vector.load %arg7[%c0_6, %c0_7] : memref<16x128xf32, #tpu.memory_space<vmem>>, vector<16x128xf32>
    tpu.vector_store %arg7[%c0_6, %c0_7], %7 {strides = array<i32>} : memref<16x128xf32, #tpu.memory_space<vmem>>, vector<16x128xf32>,
    %c0_i32_8 = arith.constant 0 : i32
    %9 = arith.cmpi eq, %arg2, %c0_i32_8 : i32
    %10 = arith.extui %9 : i1 to i32
    %c0_i32_9 = arith.constant 0 : i32
    %11 = arith.cmpi ne, %10, %c0_i32_9 : i32
    scf.if %11 {
      %c0_10 = arith.constant 0 : index
      %c0_11 = arith.constant 0 : index
      %12 = vector.load %arg7[%c0_10, %c0_11] : memref<16x128xf32, #tpu.memory_space<vmem>>, vector<16x128xf32>
      %c0_12 = arith.constant 0 : index
      %c0_13 = arith.constant 0 : index
      %13 = vector.load %arg5[%c0_12, %c0_13] : memref<1x128xf32, #tpu.memory_space<vmem>>, vector<1x128xf32>
      %14 = vector.broadcast %13 : vector<1x128xf32> to vector<16x128xf32>
      %15 = arith.addf %12, %14 : vector<16x128xf32>
      %cst_14 = arith.constant 0.000000e+00 : f32
      %16 = vector.broadcast %cst_14 : f32 to vector<16x128xf32>
      %17 = arith.maximumf %15, %16 : vector<16x128xf32>
      %c0_15 = arith.constant 0 : index
      %c0_16 = arith.constant 0 : index
      %18 = vector.load %arg6[%c0_15, %c0_16] : memref<16x128xf32, #tpu.memory_space<vmem>>, vector<16x128xf32>
      tpu.vector_store %arg6[%c0_15, %c0_16], %17 {strides = array<i32>} : memref<16x128xf32, #tpu.memory_space<vmem>>, vector<16x128xf32>,
    } else {
    }
    return
  }
  func.func @transform_0(%arg0: i32, %arg1: i32, %arg2: i32) -> (i32, i32) {
    %c0_i32 = arith.constant 0 : i32
    return %arg0, %arg2 : i32, i32
  }
  func.func @transform_1(%arg0: i32, %arg1: i32, %arg2: i32) -> (i32, i32) {
    %c0_i32 = arith.constant 0 : i32
    return %arg2, %arg1 : i32, i32
  }
  func.func @transform_2(%arg0: i32, %arg1: i32, %arg2: i32) -> (i32, i32) {
    %c0_i32 = arith.constant 0 : i32
    %c0_i32_0 = arith.constant 0 : i32
    return %c0_i32, %arg1 : i32, i32
  }
  func.func @transform_3(%arg0: i32, %arg1: i32, %arg2: i32) -> (i32, i32) {
    %c0_i32 = arith.constant 0 : i32
    return %arg0, %arg1 : i32, i32
  }
}

</mosaic_0001>

<llo_original>
// kernel: tpu_custom_call.1
$region0: #{tpu_custom_call.1}
  #allocation0 [shape = 'u32[]', space=smem, size = 0x4, offset = 0x4, fixed_abs, tag = 'smem constant byte address 0x4 - core index']
  #allocation1 [shape = 'u32[144,128]{1,0:T(1,128)}', space=vmem, size = 0x12000, scoped, tag = 'internal scratch']
  #allocation2 [shape = 'f32[16,128]{1,0:T(8,128)}', space=vmem, size = 0x2000, scoped, tag = 'scratch operand']
  %s0 = inlined_call_operand.hbm [shape: f32[16,32], index: 0, kind: input, shape index: {}]
  %s1 = inlined_call_operand.hbm [shape: f32[32,128], index: 1, kind: input, shape index: {}]
  %s2 = inlined_call_operand.vmem [shape: f32[1,128], index: 2, kind: input, shape index: {}]
  %s3 = inlined_call_operand.hbm [shape: f32[16,128], index: 3, kind: output, shape index: {}]
  %s4 = sld [smem:[#allocation0]]
  $region38: #{tpu_custom_call.1} parent=0
    _
  %s6 = ssub.s32 1, %s4
  %s7 = scalar_select 0, %s6, %s4
  $region1: #{tpu_custom_call.1} parent=0
    #allocation3 [shape = 'u8[8192]{0}', space=vmem, size = 0x2000, scoped, tag = 'input window, operand 0, single buffered']
    #allocation4 [shape = 's32[1]{0}', space=sflag, size = 0x4, scoped, tag = 'scoped memory for tpu_custom_call.1']
    #allocation5 [shape = 's32[1]{0}', space=sflag, size = 0x4, scoped, tag = 'scoped memory for tpu_custom_call.1']
    #allocation6 [shape = 'u8[16384]{0}', space=vmem, size = 0x4000, scoped, tag = 'input window, operand 1, single buffered']
    #allocation7 [shape = 's32[1]{0}', space=sflag, size = 0x4, scoped, tag = 'scoped memory for tpu_custom_call.1']
    #allocation8 [shape = 'u8[8192]{0}', space=vmem, size = 0x2000, scoped, tag = 'output window, operand 0, single buffered']
    %8 = vsyncpa [#allocation4], 0
    %9 = vsyncpa [#allocation7], 0
    %10 = vsyncpa [#allocation5], 0
    // Predicated region
    $region2: #{tpu_custom_call.1} parent=1 // pred_check
      _
    $region3: #{tpu_custom_call.1} parent=1 // pred_check_branch
      %12 = sbr.rel (0) target = $region5
    $region4: #{tpu_custom_call.1} parent=1 // pred_region
      %s14 = ssub.s32 256, 256
      %15 = vsyncadd [#allocation4], %s14
      %s16 = sshll.u32 [#allocation3], 4
      %s17 = int_to_ptr.vmem [resolvable:$true] %s16
      %22 = dma.hbm_to_vmem [thread:$0]  %s0, 256, %s17, [#allocation4], 128, 128, 8
    $region5: #{tpu_custom_call.1} parent=1 // pred_fallthru
      _
    // Predicated region
    $region6: #{tpu_custom_call.1} parent=1 // pred_check
      _
    $region7: #{tpu_custom_call.1} parent=1 // pred_check_branch
      %24 = sbr.rel (0) target = $region9
    $region8: #{tpu_custom_call.1} parent=1 // pred_region
      %s26 = ssub.s32 512, 512
      %27 = vsyncadd [#allocation7], %s26
      %s28 = sshll.u32 [#allocation6], 4
      %s29 = int_to_ptr.vmem [resolvable:$true] %s28
      %34 = dma.hbm_to_vmem [thread:$0]  %s1, 512, %s29, [#allocation7], 128, 128, 8
    $region9: #{tpu_custom_call.1} parent=1 // pred_fallthru
      _
    // Predicated region
    $region10: #{tpu_custom_call.1} parent=1 // pred_check
      _
    $region11: #{tpu_custom_call.1} parent=1 // pred_check_branch
      %36 = sbr.rel (0) target = $region13
    $region12: #{tpu_custom_call.1} parent=1 // pred_region
      _
    $region13: #{tpu_custom_call.1} parent=1 // pred_fallthru
      _
    // Predicated region
    $region14: #{tpu_custom_call.1} parent=1 // pred_check
      _
    $region15: #{tpu_custom_call.1} parent=1 // pred_check_branch
      %38 = sbr.rel (0) target = $region17
    $region16: #{tpu_custom_call.1} parent=1 // pred_region
      %39 = dma.done [#allocation4], 256
    $region17: #{tpu_custom_call.1} parent=1 // pred_fallthru
      _
    // Predicated region
    $region18: #{tpu_custom_call.1} parent=1 // pred_check
      _
    $region19: #{tpu_custom_call.1} parent=1 // pred_check_branch
      %41 = sbr.rel (0) target = $region21
    $region20: #{tpu_custom_call.1} parent=1 // pred_region
      %42 = dma.done [#allocation7], 512
    $region21: #{tpu_custom_call.1} parent=1 // pred_fallthru
      _
    %p43 = scmp.eq.s32.totalorder 0, 0
    // Predicated region
    $region22: #{tpu_custom_call.1} parent=1 // pred_check
      %p44 = pneg %p43
    $region23: #{tpu_custom_call.1} parent=1 // pred_check_branch
      %46 = sbr.rel (%p44) target = $region25
    $region24: #{tpu_custom_call.1} parent=1 // pred_region
      %47 = vst [vmem:[#allocation2] sm:$0xff] 0.0
      %48 = vst [vmem:[#allocation2 + $0x8] sm:$0xff] 0.0
    $region25: #{tpu_custom_call.1} parent=1 // pred_fallthru
      _
    %v49 = vld [vmem:[#allocation2] sm:$0xff]
    %v50 = vld [vmem:[#allocation2 + $0x8] sm:$0xff]
    %v51 = vld [vmem:[#allocation3] sm:$0xff]
    %v52 = vld [vmem:[#allocation3 + $0x8] sm:$0xff]
    %v53 = vld [vmem:[#allocation6] sm:$0xff]
    %v54 = vld [vmem:[#allocation6 + $0x8] sm:$0xff]
    %v55 = vld [vmem:[#allocation6 + $0x10] sm:$0xff]
    %v56 = vld [vmem:[#allocation6 + $0x18] sm:$0xff]
    %vm57 = vcmask 261120
    %v59 = vsel %vm57, %v51, 0
    %v62 = vsel %vm57, %v52, 0
    %64 = vmatprep.subr.mxu0 0.0
    %65 = vmatpush1.msra.mxu0 0.0
    %66 = vmatprep.subr.mxu0 0.0
    %67 = vmatpush1.msra.mxu0 0.0
    %68 = vmatprep.subr.mxu0 0.0
    %69 = vmatpush1.msra.mxu0 0.0
    %70 = vmatprep.subr.mxu0 0.0
    %71 = vmatpush1.msra.mxu0 0.0
    %72 = vmatprep.subr.mxu0 0.0
    %73 = vmatpush1.msra.mxu0 0.0
    %74 = vmatprep.subr.mxu0 0.0
    %75 = vmatpush1.msra.mxu0 0.0
    %76 = vmatprep.subr.mxu0 0.0
    %77 = vmatpush1.msra.mxu0 0.0
    %78 = vmatprep.subr.mxu0 0.0
    %79 = vmatpush1.msra.mxu0 0.0
    %80 = vmatprep.subr.mxu0 0.0
    %81 = vmatpush1.msra.mxu0 0.0
    %82 = vmatprep.subr.mxu0 0.0
    %83 = vmatpush1.msra.mxu0 0.0
    %84 = vmatprep.subr.mxu0 0.0
    %85 = vmatpush1.msra.mxu0 0.0
    %86 = vmatprep.subr.mxu0 0.0
    %87 = vmatpush1.msra.mxu0 0.0
    %88 = vmatprep.subr.mxu0 0.0
    %89 = vmatpush1.msra.mxu0 %v56
    %90 = vmatprep.subr.mxu0 0.0
    %91 = vmatpush1.msra.mxu0 %v55
    %92 = vmatprep.subr.mxu0 0.0
    %93 = vmatpush1.msra.mxu0 %v54
    %94 = vmatprep.subr.mxu0 0.0
    %95 = vmatpush1.msra.mxu0 %v53
    %96 = vmatprep.subr.mxu0 0.0
    %97 = vmatpush2.msra.mxu0 0.0
    %98 = vmatprep.subr.mxu0 0.0
    %99 = vmatpush2.msra.mxu0 0.0
    %100 = vmatprep.subr.mxu0 0.0
    %101 = vmatpush2.msra.mxu0 0.0
    %102 = vmatprep.subr.mxu0 0.0
    %103 = vmatpush2.msra.mxu0 0.0
    %104 = vmatprep.subr.mxu0 0.0
    %105 = vmatpush2.msra.mxu0 0.0
    %106 = vmatprep.subr.mxu0 0.0
    %107 = vmatpush2.msra.mxu0 0.0
    %108 = vmatprep.subr.mxu0 0.0
    %109 = vmatpush2.msra.mxu0 0.0
    %110 = vmatprep.subr.mxu0 0.0
    %111 = vmatpush2.msra.mxu0 0.0
    %112 = vmatprep.subr.mxu0 0.0
    %113 = vmatpush2.msra.mxu0 0.0
    %114 = vmatprep.subr.mxu0 0.0
    %115 = vmatpush2.msra.mxu0 0.0
    %116 = vmatprep.subr.mxu0 0.0
    %117 = vmatpush2.msra.mxu0 0.0
    %118 = vmatprep.subr.mxu0 0.0
    %119 = vmatpush2.msra.mxu0 0.0
    %120 = vmatprep.subr.mxu0 0.0
    %121 = vmatpush2.msra.mxu0 0.0
    %122 = vmatprep.subr.mxu0 0.0
    %123 = vmatpush2.msra.mxu0 0.0
    %124 = vmatprep.subr.mxu0 0.0
    %125 = vmatpush2.msra.mxu0 0.0
    %126 = vmatprep.subr.mxu0 0.0
    %127 = vmatpush2.msra.mxu0 0.0
    %128 = vmatprep.mubr.f32.mxu0 0.0
    %129 = vmatmul.mubr.f32.gmra.mxu0 %v59
    %v130 = vpop.f32.mrf.mxu0
    %v131 = vadd.f32 0.0, %v130
    %v132 = vpop.f32.mrf.mxu0
    %133 = vmatprep.mubr.f32.mxu0 0.0
    %134 = vmatmul.mubr.f32.gmra.mxu0 %v62
    %v135 = vpop.f32.mrf.mxu0
    %v136 = vadd.f32 0.0, %v135
    %v137 = vpop.f32.mrf.mxu0
    %138 = vdwg.mxu0
    %v139 = vadd.f32 %v49, %v131
    %v140 = vadd.f32 %v50, %v136
    %141 = vst [vmem:[#allocation2] sm:$0xff] %v139
    %142 = vst [vmem:[#allocation2 + $0x8] sm:$0xff] %v140
    // Predicated region
    $region26: #{tpu_custom_call.1} parent=1 // pred_check
      %p143 = pneg %p43
    $region27: #{tpu_custom_call.1} parent=1 // pred_check_branch
      %145 = sbr.rel (%p143) target = $region29
    $region28: #{tpu_custom_call.1} parent=1 // pred_region
      %v146 = vld [vmem:[#allocation2] sm:$0xff]
      %v147 = vld [vmem:[#allocation2 + $0x8] sm:$0xff]
      %v148 = vld [vmem:[%s2] sm:$0x1]
      %v150 = vlaneseq
      %v151 = vshrl.u32 %v150, 7
      %v152 = vsub.s32 0, %v151
      %v153 = vrot.slane %v148, %v152
      %v155 = vadd.f32 %v146, %v153
      %v156 = vadd.f32 %v147, %v153
      %v157 = vmax.f32 %v155, 0.0
      %v158 = vmax.f32 %v156, 0.0
      %159 = vst [vmem:[#allocation8] sm:$0xff] %v157
      %160 = vst [vmem:[#allocation8 + $0x8] sm:$0xff] %v158
    $region29: #{tpu_custom_call.1} parent=1 // pred_fallthru
      _
    // Predicated region
    $region30: #{tpu_custom_call.1} parent=1 // pred_check
      _
    $region31: #{tpu_custom_call.1} parent=1 // pred_check_branch
      %162 = sbr.rel (0) target = $region33
    $region32: #{tpu_custom_call.1} parent=1 // pred_region
      %s164 = ssub.s32 256, 256
      %165 = vsyncadd [#allocation5], %s164
      %s166 = sshll.u32 [#allocation8], 4
      %s167 = int_to_ptr.vmem [resolvable:$true] %s166
      %172 = dma.vmem_to_hbm [thread:$0]  %s167, 256, %s3, [#allocation5], 128, 128, 8
    $region33: #{tpu_custom_call.1} parent=1 // pred_fallthru
      _
    // Predicated region
    $region34: #{tpu_custom_call.1} parent=1 // pred_check
      _
    $region35: #{tpu_custom_call.1} parent=1 // pred_check_branch
      %174 = sbr.rel (0) target = $region37
    $region36: #{tpu_custom_call.1} parent=1 // pred_region
      %175 = dma.done [#allocation5], 256
    $region37: #{tpu_custom_call.1} parent=1 // pred_fallthru
      _
    %176 = vsyncpa [#allocation4], 1
    %177 = vsyncpa [#allocation7], 1
    %178 = vsyncpa [#allocation5], 1

</llo_original>
